<compile_context>
chip_gen: v7x
topology: tpu7x:2x2x1
jax: 0.10.0
libtpu: 0.0.40
codegen_flags: <defaults>
</compile_context>

<pallas_src>
import jax
import jax.numpy as jnp
from jax import lax
from jax.experimental import pallas as pl
from jax.experimental.pallas import tpu as pltpu


def _round_up(x, m):
    return (x + m - 1) // m * m


def _linear_kernel(b_ref, x_ref, w_ref, o_ref):
    # w_ref: (fold, fold*K) block-diagonal replicated weight (tiny, resident).
    # x_ref: (tile_rows, fold*K) lane-dense packed samples (fold per row).
    # Contract the last dims of both operands (q @ k^T pattern):
    #   (fold, fold*K) . (tile_rows, fold*K) -> (fold, tile_rows)
    # so the output slab is lane-dense along tile_rows (unmasked stores).
    acc = lax.dot_general(
        w_ref[...],
        x_ref[...],
        dimension_numbers=(((1,), (1,)), ((), ())),
        preferred_element_type=jnp.float32,
    )
    o_ref[...] = (acc + b_ref[0]).astype(o_ref.dtype)


def _linear_pallas(x, weight, bias, *, tile_n=None):
    n, k = x.shape

    # Pack `fold` samples per row so rows are lane-dense (fold*K % 128 == 0).
    fold = 1
    while (fold * k) % 128 != 0 and fold < 64:
        fold *= 2
    if (fold * k) % 128 != 0:
        fold = 1  # awkward K: fall back to unpacked rows (correct, just padded)
    kf = fold * k
    chunk = fold * 128  # tile granularity: keeps tile_rows a multiple of 128

    if tile_n is None:
        # >= ~1 MiB of x per grid step (amortizes the ~0.35us per-step cost),
        # ~N/8 so each TensorCore keeps >=4 pipelined steps after the megacore
        # split, capped at 8 MiB/buffer so double-buffered tiles fit all VMEMs.
        tile_n = max(8192, min(65536, n // 8))
    tile_n = min(_round_up(tile_n, chunk), _round_up(n, chunk))
    n_pad = _round_up(n, tile_n)

    if n_pad != n:
        x = jnp.pad(x, ((0, n_pad - n), (0, 0)))
    x_packed = x.reshape(n_pad // fold, kf)  # free contiguous reshape
    rows = n_pad // fold
    tile_rows = tile_n // fold

    # Block-"diagonal" weight: w_sel[s, s*K + c] = weight[c, 0].
    w_flat = weight.reshape(-1).astype(x.dtype)
    w_sel = (jnp.eye(fold, dtype=x.dtype)[:, :, None] * w_flat[None, None, :]
             ).reshape(fold, kf)

    grid = (n_pad // tile_n,)

    # Explicit VMEM budget (double-buffered x + out, plus headroom); covers
    # v5e's small default scoped limit and stays within v7x's 64 MiB physical.
    x_tile_bytes = tile_rows * kf * 4
    out_tile_bytes = max(fold, 8) * tile_rows * 4
    vmem_limit = min(64 << 20, max(32 << 20, 3 * (x_tile_bytes + out_tile_bytes)))

    out_packed = pl.pallas_call(
        _linear_kernel,
        out_shape=jax.ShapeDtypeStruct((fold, rows), x.dtype),
        grid_spec=pltpu.PrefetchScalarGridSpec(
            num_scalar_prefetch=0,
            grid=grid,
            in_specs=[
                pl.BlockSpec(memory_space=pltpu.SMEM),             # bias scalar
                pl.BlockSpec((tile_rows, kf), lambda i: (i, 0)),   # x batch tile
                pl.BlockSpec((fold, kf), lambda i: (0, 0)),        # weight block
            ],
            out_specs=pl.BlockSpec((fold, tile_rows), lambda i: (0, i)),
        ),
        compiler_params=pltpu.CompilerParams(
            dimension_semantics=("parallel",),
            vmem_limit_bytes=vmem_limit,
        ),
        cost_estimate=pl.CostEstimate(
            flops=2 * n_pad * kf,
            transcendentals=0,
            bytes_accessed=4 * (n_pad * k + fold * kf + n_pad),
        ),
    )(bias, x_packed, w_sel)

    # out_packed[s, r] = y[fold*r + s]; transpose/reshape (only N*4 bytes)
    # back to the PyTorch (N, 1) layout.
    return out_packed.T.reshape(n_pad, 1)[:n]


def linear_model(x, weight, bias, *, tile_n=None, min_pallas_bytes=4 << 20):
    """x: (N, K) f32, weight: (K, 1) f32, bias: (1,) f32 -> (N, 1) f32."""
    n, k = x.shape
    if n * k * x.dtype.itemsize < min_pallas_bytes:
        # Small batch: Pallas dispatch + padding + grid overhead dominates;
        # plain XLA is strictly faster here.
        return x @ weight + bias
    return _linear_pallas(x, weight, bias, tile_n=tile_n)


if __name__ == "__main__":
    ndim = 32

    key = jax.random.PRNGKey(0)
    kw, kb, k1, k2, k3 = jax.random.split(key, 5)

    # Parameters matching the nn.Parameter shapes in the PyTorch module.
    weight = jax.random.normal(kw, (ndim, 1), dtype=jnp.float32)
    bias = jax.random.normal(kb, (1,), dtype=jnp.float32)

    # Tiny batch -> public entry point takes the plain-XLA fast path.
    x_small = jax.random.normal(k1, (8, ndim), dtype=jnp.float32)
    out_small = jax.block_until_ready(linear_model(x_small, weight, bias))
    assert out_small.shape == (8, 1)
    assert jnp.allclose(out_small, x_small @ weight + bias, atol=1e-5, rtol=1e-5)

    # Force the Pallas kernel at a small shape (single tile, padded batch).
    x_one = jax.random.normal(k2, (256, ndim), dtype=jnp.float32)
    out_one = jax.block_until_ready(
        linear_model(x_one, weight, bias, min_pallas_bytes=0))
    assert out_one.shape == (256, 1)
    assert jnp.allclose(out_one, x_one @ weight + bias, atol=1e-4, rtol=1e-4)

    # Multi-tile Pallas path (4 grid steps) exercising the pipelined DMA.
    x_big = jax.random.normal(k3, (8192, ndim), dtype=jnp.float32)
    out_big = jax.block_until_ready(
        linear_model(x_big, weight, bias, tile_n=2048, min_pallas_bytes=0))
    assert out_big.shape == (8192, 1)
    assert jnp.allclose(out_big, x_big @ weight + bias, atol=1e-4, rtol=1e-4)

    print("KERNEL_OK")
</pallas_src>

<mosaic_0001>
module attributes {stable_mosaic.version = 11 : i64} {
  func.func @_linear_kernel(%arg0: i32, %arg1: memref<1xf32, #tpu.memory_space<smem>>, %arg2: memref<128x128xf32, #tpu.memory_space<vmem>>, %arg3: memref<4x128xf32, #tpu.memory_space<vmem>>, %arg4: memref<4x128xf32, #tpu.memory_space<vmem>>) attributes {dimension_semantics = [#tpu.dimension_semantics<parallel>], iteration_bounds = array<i64: 1>, scalar_prefetch = 0 : i64, scratch_operands = 0 : i64, tpu.core_type = #tpu.core_type<tc>, window_params = [{transform_indices = @transform_0, window_bounds = array<i64: 1>}, {transform_indices = @transform_1, window_bounds = array<i64: 128, 128>}, {pipeline_mode = #tpu.pipeline_mode<synchronous>, transform_indices = @transform_2, window_bounds = array<i64: 4, 128>}, {transform_indices = @transform_3, window_bounds = array<i64: 4, 128>}]} {
    %c0 = arith.constant 0 : index
    %c0_0 = arith.constant 0 : index
    %0 = vector.load %arg3[%c0, %c0_0] : memref<4x128xf32, #tpu.memory_space<vmem>>, vector<4x128xf32>
    %c0_1 = arith.constant 0 : index
    %c0_2 = arith.constant 0 : index
    %1 = vector.load %arg2[%c0_1, %c0_2] : memref<128x128xf32, #tpu.memory_space<vmem>>, vector<128x128xf32>
    %cst = arith.constant dense<0.000000e+00> : vector<4x128xf32>
    %2 = tpu.matmul %0, %1, %cst {dimension_numbers = #tpu.dot_dimension_numbers<[1], [1], [0], [0], [0, 0, 1, 0], [], []>} : vector<4x128xf32>, vector<128x128xf32>, vector<4x128xf32> -> vector<4x128xf32>
    %c0_3 = arith.constant 0 : index
    %3 = memref.load %arg1[%c0_3] : memref<1xf32, #tpu.memory_space<smem>>
    %4 = vector.broadcast %3 : f32 to vector<4x128xf32>
    %5 = arith.addf %2, %4 : vector<4x128xf32>
    %c0_4 = arith.constant 0 : index
    %c0_5 = arith.constant 0 : index
    %6 = vector.load %arg4[%c0_4, %c0_5] : memref<4x128xf32, #tpu.memory_space<vmem>>, vector<4x128xf32>
    tpu.vector_store %arg4[%c0_4, %c0_5], %5 {strides = array<i32>} : memref<4x128xf32, #tpu.memory_space<vmem>>, vector<4x128xf32>,
    return
  }
  func.func @transform_0(%arg0: i32) -> i32 {
    %c0_i32 = arith.constant 0 : i32
    %c0_i32_0 = arith.constant 0 : i32
    return %c0_i32 : i32
  }
  func.func @transform_1(%arg0: i32) -> (i32, i32) {
    %c0_i32 = arith.constant 0 : i32
    %c0_i32_0 = arith.constant 0 : i32
    return %arg0, %c0_i32 : i32, i32
  }
  func.func @transform_2(%arg0: i32) -> (i32, i32) {
    %c0_i32 = arith.constant 0 : i32
    %c0_i32_0 = arith.constant 0 : i32
    %c0_i32_1 = arith.constant 0 : i32
    return %c0_i32, %c0_i32_0 : i32, i32
  }
  func.func @transform_3(%arg0: i32) -> (i32, i32) {
    %c0_i32 = arith.constant 0 : i32
    %c0_i32_0 = arith.constant 0 : i32
    return %c0_i32, %arg0 : i32, i32
  }
}

</mosaic_0001>

<llo_original>
// kernel: tpu_custom_call.1
$region0: #{tpu_custom_call.1}
  #allocation0 [shape = 'u32[]', space=smem, size = 0x4, offset = 0x4, fixed_abs, tag = 'smem constant byte address 0x4 - core index']
  #allocation1 [shape = 'u32[144,128]{1,0:T(1,128)}', space=vmem, size = 0x12000, scoped, tag = 'internal scratch']
  #allocation2 [shape = 'f32[1]{0:T(128)S(6)}', space=smem, size = 0x200, scoped, tag = 'scoped memory for tpu_custom_call.1']
  %s0 = inlined_call_operand.<no memory space> [shape: f32[1], index: 0, kind: input, shape index: {}]
  %s1 = inlined_call_operand.hbm [shape: f32[128,128], index: 1, kind: input, shape index: {}]
  %s2 = inlined_call_operand.vmem [shape: f32[4,128], index: 2, kind: input, shape index: {}]
  %s3 = inlined_call_operand.hbm [shape: f32[4,128], index: 3, kind: output, shape index: {}]
  %s4 = sld [smem:[#allocation0]]
  $region26: #{tpu_custom_call.1} parent=0
    _
  %s6 = ssub.s32 1, %s4
  %s7 = scalar_select 0, %s6, %s4
  %8 = sst [smem:[#allocation2]] %s0
  $region1: #{tpu_custom_call.1} parent=0
    #allocation3 [shape = 'u8[65536]{0}', space=vmem, size = 0x10000, scoped, tag = 'input window, operand 1, single buffered']
    #allocation4 [shape = 's32[1]{0}', space=sflag, size = 0x4, scoped, tag = 'scoped memory for tpu_custom_call.1']
    #allocation5 [shape = 's32[1]{0}', space=sflag, size = 0x4, scoped, tag = 'scoped memory for tpu_custom_call.1']
    #allocation6 [shape = 'u8[2048]{0}', space=vmem, size = 0x800, scoped, tag = 'output window, operand 0, single buffered']
    %9 = vsyncpa [#allocation4], 0
    %10 = vsyncpa [#allocation5], 0
    // Predicated region
    $region2: #{tpu_custom_call.1} parent=1 // pred_check
      _
    $region3: #{tpu_custom_call.1} parent=1 // pred_check_branch
      %12 = sbr.rel (0) target = $region5
    $region4: #{tpu_custom_call.1} parent=1 // pred_region
      _
    $region5: #{tpu_custom_call.1} parent=1 // pred_fallthru
      _
    // Predicated region
    $region6: #{tpu_custom_call.1} parent=1 // pred_check
      _
    $region7: #{tpu_custom_call.1} parent=1 // pred_check_branch
      %14 = sbr.rel (0) target = $region9
    $region8: #{tpu_custom_call.1} parent=1 // pred_region
      %s16 = ssub.s32 2048, 2048
      %17 = vsyncadd [#allocation4], %s16
      %s18 = sshll.u32 [#allocation3], 4
      %s19 = int_to_ptr.vmem [resolvable:$true] %s18
      %24 = dma.hbm_to_vmem [thread:$0]  %s1, 2048, %s19, [#allocation4], 128, 128, 8
    $region9: #{tpu_custom_call.1} parent=1 // pred_fallthru
      _
    // Predicated region
    $region10: #{tpu_custom_call.1} parent=1 // pred_check
      _
    $region11: #{tpu_custom_call.1} parent=1 // pred_check_branch
      %26 = sbr.rel (0) target = $region13
    $region12: #{tpu_custom_call.1} parent=1 // pred_region
      _
    $region13: #{tpu_custom_call.1} parent=1 // pred_fallthru
      _
    // Predicated region
    $region14: #{tpu_custom_call.1} parent=1 // pred_check
      _
    $region15: #{tpu_custom_call.1} parent=1 // pred_check_branch
      %28 = sbr.rel (0) target = $region17
    $region16: #{tpu_custom_call.1} parent=1 // pred_region
      %29 = dma.done [#allocation4], 2048
    $region17: #{tpu_custom_call.1} parent=1 // pred_fallthru
      _
    %v30 = vld [vmem:[%s2] sm:$0xf]
    %v31 = vld [vmem:[#allocation3] sm:$0xff]
    %v32 = vld [vmem:[#allocation3 + $0x8] sm:$0xff]
    %v33 = vld [vmem:[#allocation3 + $0x10] sm:$0xff]
    %v34 = vld [vmem:[#allocation3 + $0x18] sm:$0xff]
    %v35 = vld [vmem:[#allocation3 + $0x20] sm:$0xff]
    %v36 = vld [vmem:[#allocation3 + $0x28] sm:$0xff]
    %v37 = vld [vmem:[#allocation3 + $0x30] sm:$0xff]
    %v38 = vld [vmem:[#allocation3 + $0x38] sm:$0xff]
    %v39 = vld [vmem:[#allocation3 + $0x40] sm:$0xff]
    %v40 = vld [vmem:[#allocation3 + $0x48] sm:$0xff]
    %v41 = vld [vmem:[#allocation3 + $0x50] sm:$0xff]
    %v42 = vld [vmem:[#allocation3 + $0x58] sm:$0xff]
    %v43 = vld [vmem:[#allocation3 + $0x60] sm:$0xff]
    %v44 = vld [vmem:[#allocation3 + $0x68] sm:$0xff]
    %v45 = vld [vmem:[#allocation3 + $0x70] sm:$0xff]
    %v46 = vld [vmem:[#allocation3 + $0x78] sm:$0xff]
    %s47 = sld [smem:[#allocation2]]
    %v48 = vstv %s47
    %49 = vmatprep.subr.mxu0 0.0
    %50 = vmatpush1.xpose.msra.mxu0 %v31
    %51 = vmatprep.subr.mxu0 0.0
    %52 = vmatpush1.xpose.msra.mxu0 %v32
    %53 = vmatprep.subr.mxu0 0.0
    %54 = vmatpush1.xpose.msra.mxu0 %v33
    %55 = vmatprep.subr.mxu0 0.0
    %56 = vmatpush1.xpose.msra.mxu0 %v34
    %57 = vmatprep.subr.mxu0 0.0
    %58 = vmatpush1.xpose.msra.mxu0 %v35
    %59 = vmatprep.subr.mxu0 0.0
    %60 = vmatpush1.xpose.msra.mxu0 %v36
    %61 = vmatprep.subr.mxu0 0.0
    %62 = vmatpush1.xpose.msra.mxu0 %v37
    %63 = vmatprep.subr.mxu0 0.0
    %64 = vmatpush1.xpose.msra.mxu0 %v38
    %65 = vmatprep.subr.mxu0 0.0
    %66 = vmatpush1.xpose.msra.mxu0 %v39
    %67 = vmatprep.subr.mxu0 0.0
    %68 = vmatpush1.xpose.msra.mxu0 %v40
    %69 = vmatprep.subr.mxu0 0.0
    %70 = vmatpush1.xpose.msra.mxu0 %v41
    %71 = vmatprep.subr.mxu0 0.0
    %72 = vmatpush1.xpose.msra.mxu0 %v42
    %73 = vmatprep.subr.mxu0 0.0
    %74 = vmatpush1.xpose.msra.mxu0 %v43
    %75 = vmatprep.subr.mxu0 0.0
    %76 = vmatpush1.xpose.msra.mxu0 %v44
    %77 = vmatprep.subr.mxu0 0.0
    %78 = vmatpush1.xpose.msra.mxu0 %v45
    %79 = vmatprep.subr.mxu0 0.0
    %80 = vmatpush1.xpose.msra.mxu0 %v46
    %81 = vmatprep.subr.mxu0 0.0
    %82 = vmatpush1.xpose.msra.mxu0 0.0
    %83 = vmatprep.subr.mxu0 0.0
    %84 = vmatpush1.xpose.msra.mxu0 0.0
    %85 = vmatprep.subr.mxu0 0.0
    %86 = vmatpush1.xpose.msra.mxu0 0.0
    %87 = vmatprep.subr.mxu0 0.0
    %88 = vmatpush1.xpose.msra.mxu0 0.0
    %89 = vmatprep.subr.mxu0 0.0
    %90 = vmatpush1.xpose.msra.mxu0 0.0
    %91 = vmatprep.subr.mxu0 0.0
    %92 = vmatpush1.xpose.msra.mxu0 0.0
    %93 = vmatprep.subr.mxu0 0.0
    %94 = vmatpush1.xpose.msra.mxu0 0.0
    %95 = vmatprep.subr.mxu0 0.0
    %96 = vmatpush1.xpose.msra.mxu0 0.0
    %97 = vmatprep.subr.mxu0 0.0
    %98 = vmatpush1.xpose.msra.mxu0 0.0
    %99 = vmatprep.subr.mxu0 0.0
    %100 = vmatpush1.xpose.msra.mxu0 0.0
    %101 = vmatprep.subr.mxu0 0.0
    %102 = vmatpush1.xpose.msra.mxu0 0.0
    %103 = vmatprep.subr.mxu0 0.0
    %104 = vmatpush1.xpose.msra.mxu0 0.0
    %105 = vmatprep.subr.mxu0 0.0
    %106 = vmatpush1.xpose.msra.mxu0 0.0
    %107 = vmatprep.subr.mxu0 0.0
    %108 = vmatpush1.xpose.msra.mxu0 0.0
    %109 = vmatprep.subr.mxu0 0.0
    %110 = vmatpush1.xpose.msra.mxu0 0.0
    %111 = vmatprep.subr.mxu0 0.0
    %112 = vmatpush1.xpose.msra.mxu0 0.0
    %113 = vmatprep.mubr.f32.mxu0 0.0
    %114 = vmatmul.mubr.f32.gmra.mrb[0].mxu0 %v30
    %v115 = vpop.f32.mrb[0].mxu0
    %v116 = vadd.f32 %v48, %v115
    %v117 = vpop.f32.mrb[0].mxu0
    %118 = vdwg.mxu0
    %119 = vst [vmem:[#allocation6] sm:$0xf] %v116
    // Predicated region
    $region18: #{tpu_custom_call.1} parent=1 // pred_check
      _
    $region19: #{tpu_custom_call.1} parent=1 // pred_check_branch
      %121 = sbr.rel (0) target = $region21
    $region20: #{tpu_custom_call.1} parent=1 // pred_region
      %s123 = ssub.s32 64, 64
      %124 = vsyncadd [#allocation5], %s123
      %s126 = sshll.u32 [#allocation6], 4
      %s127 = int_to_ptr.vmem [resolvable:$true] %s126
      %129 = dma.vmem_to_hbm [thread:$0]  %s127, 64, %s3, [#allocation5]
    $region21: #{tpu_custom_call.1} parent=1 // pred_fallthru
      _
    // Predicated region
    $region22: #{tpu_custom_call.1} parent=1 // pred_check
      _
    $region23: #{tpu_custom_call.1} parent=1 // pred_check_branch
      %131 = sbr.rel (0) target = $region25
    $region24: #{tpu_custom_call.1} parent=1 // pred_region
      %132 = dma.done [#allocation5], 64
    $region25: #{tpu_custom_call.1} parent=1 // pred_fallthru
      _
    %133 = vsyncpa [#allocation4], 1
    %134 = vsyncpa [#allocation5], 1

</llo_original>
